<compile_context>
chip_gen: v5e
topology: v5e:2x2
jax: 0.10.0
libtpu: 0.0.40
codegen_flags: <defaults>
</compile_context>

<pallas_src>
import functools

import jax
import jax.numpy as jnp
from jax import lax
from jax.experimental import pallas as pl
from jax.experimental.pallas import tpu as pltpu


# ---------------------------------------------------------------------------
# Stage 1: per-head Q/K/V projection (x read once, weights resident).
# ---------------------------------------------------------------------------
def qkv_proj_kernel(x_ref, wq_ref, bq_ref, wk_ref, bk_ref, wv_ref, bv_ref,
                    q_ref, k_ref, v_ref):
    h = pl.program_id(2)
    xt = x_ref[0]                       # (TQ, E), compute dtype (MXU operand)

    def proj(w_ref, b_ref):
        y = jnp.dot(xt, w_ref[h], preferred_element_type=jnp.float32)
        return (y + b_ref[h]).astype(q_ref.dtype)

    q_ref[0, 0] = proj(wq_ref, bq_ref)  # softmax scale already folded in
    k_ref[0, 0] = proj(wk_ref, bk_ref)
    v_ref[0, 0] = proj(wv_ref, bv_ref)


# ---------------------------------------------------------------------------
# Stage 2: attention + output projection (head axis = innermost reduction).
# ---------------------------------------------------------------------------
def attn_kernel(q_ref, k_ref, v_ref, wo_ref, bo_ref, o_ref, acc_ref, *,
                head_dim, fuse_out_proj):
    h = pl.program_id(2)
    last = pl.num_programs(2) - 1

    q = q_ref[0, 0]                     # (TQ, Dh) compute dtype, pre-scaled
    k = k_ref[0, 0]                     # (S,  Dh)
    v = v_ref[0, 0]                     # (S,  Dh)
    cdt = q.dtype

    # scores = q @ k^T without materializing a transpose.
    scores = lax.dot_general(
        q, k, dimension_numbers=(((1,), (1,)), ((), ())),
        preferred_element_type=jnp.float32)                     # (TQ, S) f32

    # f32 softmax; normalization is folded into the (TQ, Dh) head output so
    # the approximate EUP reciprocal only touches a few elements.
    m = jnp.max(scores, axis=-1, keepdims=True)
    p = jnp.exp(scores - m)
    inv = pl.reciprocal(jnp.sum(p, axis=-1, keepdims=True), approx=True)
    o_h = jnp.dot(p.astype(cdt), v,
                  preferred_element_type=jnp.float32) * inv     # (TQ, Dh) f32

    if fuse_out_proj:
        # Lane-aligned per-head stash (Dh % 128 == 0); one K=E out-projection
        # matmul at the last head (full MXU contraction depth on v6e/v7x).
        off = pl.multiple_of(h * head_dim, head_dim)
        acc_ref[:, pl.ds(off, head_dim)] = o_h

        @pl.when(h == last)
        def _finalize():
            out = jnp.dot(acc_ref[...].astype(cdt), wo_ref[...],
                          preferred_element_type=jnp.float32) + bo_ref[...]
            o_ref[0] = out.astype(o_ref.dtype)
    else:
        @pl.when(h == 0)
        def _init():
            acc_ref[...] = jnp.broadcast_to(
                bo_ref[...].astype(jnp.float32), acc_ref.shape)

        # Per-head rows of W_o indexed on the leading axis (no lane slicing).
        acc_ref[...] += jnp.dot(o_h.astype(cdt), wo_ref[h],
                                preferred_element_type=jnp.float32)

        @pl.when(h == last)
        def _finalize():
            o_ref[0] = acc_ref[...].astype(o_ref.dtype)


# ---------------------------------------------------------------------------
# Generation-aware tiling helpers.
# ---------------------------------------------------------------------------
def _vmem_capacity_bytes():
    try:
        return int(pltpu.get_tpu_info().vmem_capacity_bytes)
    except Exception:
        return 64 * 1024 * 1024          # conservative fallback (v7x per-TC)


def _estimate_vmem_bytes(tq, S, E, Dh, H, cbytes, obytes):
    """Rough per-step VMEM footprint of the two kernels (max of the stages)."""
    stage1 = (2 * tq * E * cbytes            # x tile (double-buffered)
              + 2 * 3 * E * E * cbytes       # resident wq/wk/wv slabs (2 bufs)
              + 2 * 3 * H * Dh * 4           # resident biases
              + 2 * 3 * tq * Dh * cbytes     # q/k/v output tiles
              + 3 * tq * Dh * 4)             # f32 matmul temporaries
    stage2 = (2 * (tq * Dh + 2 * S * Dh) * cbytes   # q / k / v streams
              + 2 * E * E * cbytes + 2 * E * 4       # resident W_o + b_o
              + 2 * tq * E * obytes                  # output tile
              + tq * E * 4                           # f32 accumulator scratch
              + 2 * tq * S * 4                       # scores + p (f32)
              + tq * Dh * 4)                         # per-head output temp
    return max(stage1, stage2)


def _pick_q_tile(B, S, E, Dh, H, cbytes, obytes, budget):
    # Candidates: S itself plus divisors of S that are multiples of 8 (legal
    # sublane tiling), largest first, capped at 1024 rows per tile.
    cands = {S}
    cands.update(t for t in range(8, min(S, 1024) + 1, 8) if S % t == 0)
    cands = sorted(cands, reverse=True)
    tq = cands[-1]
    for t in cands:
        if _estimate_vmem_bytes(t, S, E, Dh, H, cbytes, obytes) <= budget:
            tq = t
            break
    # Megacore (v7x has 2 TensorCores sharded over the parallel grid axes):
    # make sure B * n_q >= 2 even for a single-batch call.
    if B == 1 and S // tq == 1 and S % 16 == 0:
        tq = S // 2
    return tq


# ---------------------------------------------------------------------------
# Public wrapper (matches MultiHeadSelfAttention.forward).
# ---------------------------------------------------------------------------
def multi_head_self_attention(x, params, *, num_heads,
                              compute_dtype=jnp.bfloat16):
    """params = (wq, bq, wk, bk, wv, bv, wo, bo), weights stored (in, out)."""
    B, S, E = x.shape
    assert E % num_heads == 0, "embed_dim must be divisible by num_heads"
    Dh = E // num_heads
    scale = float(Dh) ** -0.5
    wq, bq, wk, bk, wv, bv, wo, bo = params

    cdt = jnp.dtype(compute_dtype)
    cbytes = cdt.itemsize
    obytes = jnp.dtype(x.dtype).itemsize

    # ---- one-time host-side parameter re-layout ---------------------------
    # Fold the softmax scale into the Q projection (free at runtime).
    wq = wq * scale
    bq = bq * scale

    def split_heads(w):   # (E, E) -> (H, E, Dh): output columns grouped per head
        return jnp.transpose(w.reshape(E, num_heads, Dh), (1, 0, 2))

    wq_h = split_heads(wq).astype(cdt)
    wk_h = split_heads(wk).astype(cdt)
    wv_h = split_heads(wv).astype(cdt)
    bq_h = bq.reshape(num_heads, 1, Dh).astype(jnp.float32)
    bk_h = bk.reshape(num_heads, 1, Dh).astype(jnp.float32)
    bv_h = bv.reshape(num_heads, 1, Dh).astype(jnp.float32)
    bo2 = bo.reshape(1, E).astype(jnp.float32)

    # Fused K=E out-projection only when the per-head stash is lane-aligned.
    fuse_out_proj = (Dh % 128 == 0)
    if fuse_out_proj:
        wo_c = wo.astype(cdt)                                  # (E, E)
        wo_spec = pl.BlockSpec((E, E), lambda b, i, h: (0, 0))
    else:
        wo_c = wo.reshape(num_heads, Dh, E).astype(cdt)        # (H, Dh, E)
        wo_spec = pl.BlockSpec((num_heads, Dh, E), lambda b, i, h: (0, 0, 0))

    x_c = x.astype(cdt)     # bf16 MXU operands; accumulation stays f32

    # ---- generation-aware tiling / VMEM limit ------------------------------
    vmem_cap = _vmem_capacity_bytes()
    budget = int(0.55 * vmem_cap)
    TQ = _pick_q_tile(B, S, E, Dh, num_heads, cbytes, obytes, budget)
    n_q = S // TQ
    vmem_limit = min(int(0.9 * vmem_cap), vmem_cap - (4 << 20))

    cparams = pltpu.CompilerParams(
        dimension_semantics=("parallel", "parallel", "arbitrary"),
        vmem_limit_bytes=vmem_limit)

    # ---- stage 1: per-head Q/K/V projection --------------------------------
    # NOTE: constant index_maps keep the weight slabs resident (fetched once,
    # never re-DMA'd).  pipeline_mode=pl.Buffered(1) would additionally halve
    # their VMEM footprint; omitted for portability across jax versions.
    def resident(shape):
        return pl.BlockSpec(shape, lambda b, i, h: (0,) * len(shape))

    qkv_out_spec = pl.BlockSpec((1, 1, TQ, Dh), lambda b, i, h: (b, h, i, 0))

    q_h, k_h, v_h = pl.pallas_call(
        qkv_proj_kernel,
        out_shape=tuple(jax.ShapeDtypeStruct((B, num_heads, S, Dh), cdt)
                        for _ in range(3)),
        grid_spec=pltpu.PrefetchScalarGridSpec(
            num_scalar_prefetch=0,
            grid=(B, n_q, num_heads),
            in_specs=[
                pl.BlockSpec((1, TQ, E), lambda b, i, h: (b, i, 0)),   # x
                resident((num_heads, E, Dh)),                          # wq
                resident((num_heads, 1, Dh)),                          # bq
                resident((num_heads, E, Dh)),                          # wk
                resident((num_heads, 1, Dh)),                          # bk
                resident((num_heads, E, Dh)),                          # wv
                resident((num_heads, 1, Dh)),                          # bv
            ],
            out_specs=(qkv_out_spec, qkv_out_spec, qkv_out_spec),
        ),
        compiler_params=cparams,
    )(x_c, wq_h, bq_h, wk_h, bk_h, wv_h, bv_h)

    # ---- stage 2: attention + out-projection -------------------------------
    # TODO(synk): for very long sequences add a KV-tile grid axis with online
    # (flash-style) softmax; currently K/V for one head span the full sequence.
    kernel = functools.partial(attn_kernel, head_dim=Dh,
                               fuse_out_proj=fuse_out_proj)
    out = pl.pallas_call(
        kernel,
        out_shape=jax.ShapeDtypeStruct((B, S, E), x.dtype),
        grid_spec=pltpu.PrefetchScalarGridSpec(
            num_scalar_prefetch=0,
            grid=(B, n_q, num_heads),
            in_specs=[
                pl.BlockSpec((1, 1, TQ, Dh), lambda b, i, h: (b, h, i, 0)),  # q
                pl.BlockSpec((1, 1, S, Dh), lambda b, i, h: (b, h, 0, 0)),   # k
                pl.BlockSpec((1, 1, S, Dh), lambda b, i, h: (b, h, 0, 0)),   # v
                wo_spec,                                                     # wo
                pl.BlockSpec((1, E), lambda b, i, h: (0, 0)),                # bo
            ],
            out_specs=pl.BlockSpec((1, TQ, E), lambda b, i, h: (b, i, 0)),
            scratch_shapes=[pltpu.VMEM((TQ, E), jnp.float32)],
        ),
        compiler_params=cparams,
    )(q_h, k_h, v_h, wo_c, bo2)
    return out


# ---------------------------------------------------------------------------
# Pure-JAX reference (mirrors the PyTorch module).
# ---------------------------------------------------------------------------
def reference_mhsa(x, params, *, num_heads):
    B, S, E = x.shape
    Dh = E // num_heads
    scale = float(Dh) ** -0.5
    wq, bq, wk, bk, wv, bv, wo, bo = params
    q = x @ wq + bq
    k = x @ wk + bk
    v = x @ wv + bv
    q = q.reshape(B, S, num_heads, Dh).transpose(0, 2, 1, 3)
    k = k.reshape(B, S, num_heads, Dh).transpose(0, 2, 1, 3)
    v = v.reshape(B, S, num_heads, Dh).transpose(0, 2, 1, 3)
    scores = jnp.einsum("bhqd,bhkd->bhqk", q, k) * scale
    p = jax.nn.softmax(scores, axis=-1)
    o = jnp.einsum("bhqk,bhkd->bhqd", p, v)
    o = o.transpose(0, 2, 1, 3).reshape(B, S, E)
    return o @ wo + bo


if __name__ == "__main__":
    # Small shapes consistent with the module: (batch, seq, embed).
    B, S, E, H = 2, 8, 32, 4

    key = jax.random.PRNGKey(0)
    keys = jax.random.split(key, 9)
    x = jax.random.normal(keys[0], (B, S, E), dtype=jnp.float32)

    def init_linear(kw, kb):
        w = jax.random.normal(kw, (E, E), dtype=jnp.float32) * (1.0 / E ** 0.5)
        b = jax.random.normal(kb, (E,), dtype=jnp.float32) * 0.01
        return w, b

    wq, bq = init_linear(keys[1], keys[2])
    wk, bk = init_linear(keys[3], keys[4])
    wv, bv = init_linear(keys[5], keys[6])
    wo, bo = init_linear(keys[7], keys[8])
    params = (wq, bq, wk, bk, wv, bv, wo, bo)

    ref = reference_mhsa(x, params, num_heads=H)

    # Default path: bf16 MXU operands with f32 accumulation / f32 softmax.
    out = jax.block_until_ready(
        multi_head_self_attention(x, params, num_heads=H))
    assert out.shape == (B, S, E)
    assert jnp.allclose(out, ref, atol=5e-2, rtol=5e-2), "bf16 kernel mismatch"

    # f32 compute path: tight check (only the approx EUP reciprocal differs).
    out32 = jax.block_until_ready(
        multi_head_self_attention(x, params, num_heads=H,
                                  compute_dtype=jnp.float32))
    assert jnp.allclose(out32, ref, atol=5e-3, rtol=5e-3), "f32 kernel mismatch"

    print("KERNEL_OK")
</pallas_src>

<mosaic_0001>
module attributes {stable_mosaic.version = 11 : i64} {
  func.func @qkv_proj_kernel(%arg0: i32, %arg1: i32, %arg2: i32, %arg3: memref<1x8x32xbf16, #tpu.memory_space<vmem>>, %arg4: memref<4x32x8xbf16, #tpu.memory_space<vmem>>, %arg5: memref<4x1x8xf32, #tpu.memory_space<vmem>>, %arg6: memref<4x32x8xbf16, #tpu.memory_space<vmem>>, %arg7: memref<4x1x8xf32, #tpu.memory_space<vmem>>, %arg8: memref<4x32x8xbf16, #tpu.memory_space<vmem>>, %arg9: memref<4x1x8xf32, #tpu.memory_space<vmem>>, %arg10: memref<1x1x8x8xbf16, #tpu.memory_space<vmem>>, %arg11: memref<1x1x8x8xbf16, #tpu.memory_space<vmem>>, %arg12: memref<1x1x8x8xbf16, #tpu.memory_space<vmem>>) attributes {dimension_semantics = [#tpu.dimension_semantics<parallel>, #tpu.dimension_semantics<parallel>, #tpu.dimension_semantics<arbitrary>], iteration_bounds = array<i64: 2, 1, 4>, scalar_prefetch = 0 : i64, scratch_operands = 0 : i64, tpu.core_type = #tpu.core_type<tc>, window_params = [{transform_indices = @transform_0, window_bounds = array<i64: 1, 8, 32>}, {pipeline_mode = #tpu.pipeline_mode<synchronous>, transform_indices = @transform_1, window_bounds = array<i64: 4, 32, 8>}, {pipeline_mode = #tpu.pipeline_mode<synchronous>, transform_indices = @transform_2, window_bounds = array<i64: 4, 1, 8>}, {pipeline_mode = #tpu.pipeline_mode<synchronous>, transform_indices = @transform_3, window_bounds = array<i64: 4, 32, 8>}, {pipeline_mode = #tpu.pipeline_mode<synchronous>, transform_indices = @transform_4, window_bounds = array<i64: 4, 1, 8>}, {pipeline_mode = #tpu.pipeline_mode<synchronous>, transform_indices = @transform_5, window_bounds = array<i64: 4, 32, 8>}, {pipeline_mode = #tpu.pipeline_mode<synchronous>, transform_indices = @transform_6, window_bounds = array<i64: 4, 1, 8>}, {transform_indices = @transform_7, window_bounds = array<i64: 1, 1, 8, 8>}, {transform_indices = @transform_8, window_bounds = array<i64: 1, 1, 8, 8>}, {transform_indices = @transform_9, window_bounds = array<i64: 1, 1, 8, 8>}]} {
    %c0 = arith.constant 0 : index
    %c0_0 = arith.constant 0 : index
    %c0_1 = arith.constant 0 : index
    %0 = vector.load %arg3[%c0, %c0_0, %c0_1] : memref<1x8x32xbf16, #tpu.memory_space<vmem>>, vector<1x8x32xbf16>
    %1 = vector.shape_cast %0 : vector<1x8x32xbf16> to vector<8x32xbf16>
    %2 = arith.index_cast %arg2 : i32 to index
    %c0_2 = arith.constant 0 : index
    %c0_3 = arith.constant 0 : index
    %3 = vector.load %arg4[%2, %c0_2, %c0_3] : memref<4x32x8xbf16, #tpu.memory_space<vmem>>, vector<1x32x8xbf16>
    %4 = vector.shape_cast %3 : vector<1x32x8xbf16> to vector<32x8xbf16>
    %cst = arith.constant dense<0.000000e+00> : vector<8x8xf32>
    %5 = tpu.matmul %1, %4, %cst {dimension_numbers = #tpu.dot_dimension_numbers<[1], [0], [0], [1], [0, 0, 1, 1], [], []>} : vector<8x32xbf16>, vector<32x8xbf16>, vector<8x8xf32> -> vector<8x8xf32>
    %6 = arith.index_cast %arg2 : i32 to index
    %c0_4 = arith.constant 0 : index
    %c0_5 = arith.constant 0 : index
    %7 = vector.load %arg5[%6, %c0_4, %c0_5] : memref<4x1x8xf32, #tpu.memory_space<vmem>>, vector<1x1x8xf32>
    %8 = vector.shape_cast %7 : vector<1x1x8xf32> to vector<1x8xf32>
    %9 = vector.broadcast %8 : vector<1x8xf32> to vector<8x8xf32>
    %10 = arith.addf %5, %9 : vector<8x8xf32>
    %11 = arith.truncf %10 : vector<8x8xf32> to vector<8x8xbf16>
    %c0_6 = arith.constant 0 : index
    %c0_7 = arith.constant 0 : index
    %c0_8 = arith.constant 0 : index
    %c0_9 = arith.constant 0 : index
    %12 = vector.load %arg10[%c0_6, %c0_7, %c0_8, %c0_9] : memref<1x1x8x8xbf16, #tpu.memory_space<vmem>>, vector<1x1x8x8xbf16>
    %13 = vector.shape_cast %12 : vector<1x1x8x8xbf16> to vector<8x8xbf16>
    %14 = vector.shape_cast %11 : vector<8x8xbf16> to vector<1x1x8x8xbf16>
    tpu.vector_store %arg10[%c0_6, %c0_7, %c0_8, %c0_9], %14 {strides = array<i32>} : memref<1x1x8x8xbf16, #tpu.memory_space<vmem>>, vector<1x1x8x8xbf16>,
    %15 = arith.index_cast %arg2 : i32 to index
    %c0_10 = arith.constant 0 : index
    %c0_11 = arith.constant 0 : index
    %16 = vector.load %arg6[%15, %c0_10, %c0_11] : memref<4x32x8xbf16, #tpu.memory_space<vmem>>, vector<1x32x8xbf16>
    %17 = vector.shape_cast %16 : vector<1x32x8xbf16> to vector<32x8xbf16>
    %cst_12 = arith.constant dense<0.000000e+00> : vector<8x8xf32>
    %18 = tpu.matmul %1, %17, %cst_12 {dimension_numbers = #tpu.dot_dimension_numbers<[1], [0], [0], [1], [0, 0, 1, 1], [], []>} : vector<8x32xbf16>, vector<32x8xbf16>, vector<8x8xf32> -> vector<8x8xf32>
    %19 = arith.index_cast %arg2 : i32 to index
    %c0_13 = arith.constant 0 : index
    %c0_14 = arith.constant 0 : index
    %20 = vector.load %arg7[%19, %c0_13, %c0_14] : memref<4x1x8xf32, #tpu.memory_space<vmem>>, vector<1x1x8xf32>
    %21 = vector.shape_cast %20 : vector<1x1x8xf32> to vector<1x8xf32>
    %22 = vector.broadcast %21 : vector<1x8xf32> to vector<8x8xf32>
    %23 = arith.addf %18, %22 : vector<8x8xf32>
    %24 = arith.truncf %23 : vector<8x8xf32> to vector<8x8xbf16>
    %c0_15 = arith.constant 0 : index
    %c0_16 = arith.constant 0 : index
    %c0_17 = arith.constant 0 : index
    %c0_18 = arith.constant 0 : index
    %25 = vector.load %arg11[%c0_15, %c0_16, %c0_17, %c0_18] : memref<1x1x8x8xbf16, #tpu.memory_space<vmem>>, vector<1x1x8x8xbf16>
    %26 = vector.shape_cast %25 : vector<1x1x8x8xbf16> to vector<8x8xbf16>
    %27 = vector.shape_cast %24 : vector<8x8xbf16> to vector<1x1x8x8xbf16>
    tpu.vector_store %arg11[%c0_15, %c0_16, %c0_17, %c0_18], %27 {strides = array<i32>} : memref<1x1x8x8xbf16, #tpu.memory_space<vmem>>, vector<1x1x8x8xbf16>,
    %28 = arith.index_cast %arg2 : i32 to index
    %c0_19 = arith.constant 0 : index
    %c0_20 = arith.constant 0 : index
    %29 = vector.load %arg8[%28, %c0_19, %c0_20] : memref<4x32x8xbf16, #tpu.memory_space<vmem>>, vector<1x32x8xbf16>
    %30 = vector.shape_cast %29 : vector<1x32x8xbf16> to vector<32x8xbf16>
    %cst_21 = arith.constant dense<0.000000e+00> : vector<8x8xf32>
    %31 = tpu.matmul %1, %30, %cst_21 {dimension_numbers = #tpu.dot_dimension_numbers<[1], [0], [0], [1], [0, 0, 1, 1], [], []>} : vector<8x32xbf16>, vector<32x8xbf16>, vector<8x8xf32> -> vector<8x8xf32>
    %32 = arith.index_cast %arg2 : i32 to index
    %c0_22 = arith.constant 0 : index
    %c0_23 = arith.constant 0 : index
    %33 = vector.load %arg9[%32, %c0_22, %c0_23] : memref<4x1x8xf32, #tpu.memory_space<vmem>>, vector<1x1x8xf32>
    %34 = vector.shape_cast %33 : vector<1x1x8xf32> to vector<1x8xf32>
    %35 = vector.broadcast %34 : vector<1x8xf32> to vector<8x8xf32>
    %36 = arith.addf %31, %35 : vector<8x8xf32>
    %37 = arith.truncf %36 : vector<8x8xf32> to vector<8x8xbf16>
    %c0_24 = arith.constant 0 : index
    %c0_25 = arith.constant 0 : index
    %c0_26 = arith.constant 0 : index
    %c0_27 = arith.constant 0 : index
    %38 = vector.load %arg12[%c0_24, %c0_25, %c0_26, %c0_27] : memref<1x1x8x8xbf16, #tpu.memory_space<vmem>>, vector<1x1x8x8xbf16>
    %39 = vector.shape_cast %38 : vector<1x1x8x8xbf16> to vector<8x8xbf16>
    %40 = vector.shape_cast %37 : vector<8x8xbf16> to vector<1x1x8x8xbf16>
    tpu.vector_store %arg12[%c0_24, %c0_25, %c0_26, %c0_27], %40 {strides = array<i32>} : memref<1x1x8x8xbf16, #tpu.memory_space<vmem>>, vector<1x1x8x8xbf16>,
    return
  }
  func.func @transform_0(%arg0: i32, %arg1: i32, %arg2: i32) -> (i32, i32, i32) {
    %c0_i32 = arith.constant 0 : i32
    %c0_i32_0 = arith.constant 0 : i32
    return %arg0, %arg1, %c0_i32 : i32, i32, i32
  }
  func.func @transform_1(%arg0: i32, %arg1: i32, %arg2: i32) -> (i32, i32, i32) {
    %c0_i32 = arith.constant 0 : i32
    %c0_i32_0 = arith.constant 0 : i32
    %c0_i32_1 = arith.constant 0 : i32
    %c0_i32_2 = arith.constant 0 : i32
    return %c0_i32, %c0_i32_0, %c0_i32_1 : i32, i32, i32
  }
  func.func @transform_2(%arg0: i32, %arg1: i32, %arg2: i32) -> (i32, i32, i32) {
    %c0_i32 = arith.constant 0 : i32
    %c0_i32_0 = arith.constant 0 : i32
    %c0_i32_1 = arith.constant 0 : i32
    %c0_i32_2 = arith.constant 0 : i32
    return %c0_i32, %c0_i32_0, %c0_i32_1 : i32, i32, i32
  }
  func.func @transform_3(%arg0: i32, %arg1: i32, %arg2: i32) -> (i32, i32, i32) {
    %c0_i32 = arith.constant 0 : i32
    %c0_i32_0 = arith.constant 0 : i32
    %c0_i32_1 = arith.constant 0 : i32
    %c0_i32_2 = arith.constant 0 : i32
    return %c0_i32, %c0_i32_0, %c0_i32_1 : i32, i32, i32
  }
  func.func @transform_4(%arg0: i32, %arg1: i32, %arg2: i32) -> (i32, i32, i32) {
    %c0_i32 = arith.constant 0 : i32
    %c0_i32_0 = arith.constant 0 : i32
    %c0_i32_1 = arith.constant 0 : i32
    %c0_i32_2 = arith.constant 0 : i32
    return %c0_i32, %c0_i32_0, %c0_i32_1 : i32, i32, i32
  }
  func.func @transform_5(%arg0: i32, %arg1: i32, %arg2: i32) -> (i32, i32, i32) {
    %c0_i32 = arith.constant 0 : i32
    %c0_i32_0 = arith.constant 0 : i32
    %c0_i32_1 = arith.constant 0 : i32
    %c0_i32_2 = arith.constant 0 : i32
    return %c0_i32, %c0_i32_0, %c0_i32_1 : i32, i32, i32
  }
  func.func @transform_6(%arg0: i32, %arg1: i32, %arg2: i32) -> (i32, i32, i32) {
    %c0_i32 = arith.constant 0 : i32
    %c0_i32_0 = arith.constant 0 : i32
    %c0_i32_1 = arith.constant 0 : i32
    %c0_i32_2 = arith.constant 0 : i32
    return %c0_i32, %c0_i32_0, %c0_i32_1 : i32, i32, i32
  }
  func.func @transform_7(%arg0: i32, %arg1: i32, %arg2: i32) -> (i32, i32, i32, i32) {
    %c0_i32 = arith.constant 0 : i32
    %c0_i32_0 = arith.constant 0 : i32
    return %arg0, %arg2, %arg1, %c0_i32 : i32, i32, i32, i32
  }
  func.func @transform_8(%arg0: i32, %arg1: i32, %arg2: i32) -> (i32, i32, i32, i32) {
    %c0_i32 = arith.constant 0 : i32
    %c0_i32_0 = arith.constant 0 : i32
    return %arg0, %arg2, %arg1, %c0_i32 : i32, i32, i32, i32
  }
  func.func @transform_9(%arg0: i32, %arg1: i32, %arg2: i32) -> (i32, i32, i32, i32) {
    %c0_i32 = arith.constant 0 : i32
    %c0_i32_0 = arith.constant 0 : i32
    return %arg0, %arg2, %arg1, %c0_i32 : i32, i32, i32, i32
  }
}

</mosaic_0001>

<llo_original>
// kernel: tpu_custom_call.1
$region0: #{tpu_custom_call.1}
  #allocation0 [shape = 'u32[]', space=smem, size = 0x4, offset = 0x4, fixed_abs, tag = 'smem constant byte address 0x4 - core index']
  #allocation1 [shape = 'u32[72,128]{1,0:T(1,128)}', space=vmem, size = 0x9000, scoped, tag = 'internal scratch']
  %s0 = inlined_call_operand.vmem [shape: bf16[2,8,32], index: 0, kind: input, shape index: {}]
  %s1 = inlined_call_operand.vmem [shape: bf16[4,32,8], index: 1, kind: input, shape index: {}]
  %s2 = inlined_call_operand.vmem [shape: f32[4,1,8], index: 2, kind: input, shape index: {}]
  %s3 = inlined_call_operand.vmem [shape: bf16[4,32,8], index: 3, kind: input, shape index: {}]
  %s4 = inlined_call_operand.vmem [shape: f32[4,1,8], index: 4, kind: input, shape index: {}]
  %s5 = inlined_call_operand.vmem [shape: bf16[4,32,8], index: 5, kind: input, shape index: {}]
  %s6 = inlined_call_operand.vmem [shape: f32[4,1,8], index: 6, kind: input, shape index: {}]
  %s7 = inlined_call_operand.hbm [shape: bf16[2,4,8,8], index: 7, kind: output, shape index: {0}]
  %s8 = inlined_call_operand.hbm [shape: bf16[2,4,8,8], index: 8, kind: output, shape index: {1}]
  %s9 = inlined_call_operand.hbm [shape: bf16[2,4,8,8], index: 9, kind: output, shape index: {2}]
  %10 = xla_tuple %s7, %s8, %s9
  %s11 = sld [smem:[#allocation0]]
  $region77: #{tpu_custom_call.1} parent=0
    _
  %s13 = ssub.s32 1, %s11
  %s14 = scalar_select 0, %s13, %s11
  $region1: #{tpu_custom_call.1} parent=0
    #allocation2 [shape = 'u8[4096]{0}', space=vmem, size = 0x1000, scoped, tag = 'output window, operand 0']
    #allocation3 [shape = 's32[2]{0}', space=sflag, size = 0x8, scoped, tag = 'scoped memory for tpu_custom_call.1']
    #allocation4 [shape = 'u8[4096]{0}', space=vmem, size = 0x1000, scoped, tag = 'output window, operand 1']
    #allocation5 [shape = 's32[2]{0}', space=sflag, size = 0x8, scoped, tag = 'scoped memory for tpu_custom_call.1']
    #allocation6 [shape = 'u8[4096]{0}', space=vmem, size = 0x1000, scoped, tag = 'output window, operand 2']
    %15 = vsyncpa [#allocation3], 0
    %s16 = scalar_lea.sflag [#allocation3], 1
    %17 = vsyncpa %s16, 0
    %18 = vsyncpa [#allocation5], 0
    %s19 = scalar_lea.sflag [#allocation5], 1
    %20 = vsyncpa %s19, 0
    loop: start=0, step=1, limit=10
    $region2: #{tpu_custom_call.1} parent=1 // loop_pre_header
      _
    $region3: #{tpu_custom_call.1} parent=1 // loop_header
      %s22 = sphi 0, %s26
      %p23 = scmp.ge.s32.totalorder %s22, 10
      %s29 = sphi 0, %s48
      %s30 = sphi 0, %s44
      %s31 = sphi 0, %s40
      %s32 = sphi 0, %s29
      %s33 = sphi 0, %s30
      %s34 = sphi 0, %s31
      %s35 = sphi 0, %s32
      %s36 = sphi 0, %s33
      %s37 = sphi 0, %s34
      %s53 = sphi 0, %s55
      %s56 = sphi 0, %s53
      %s57 = sphi 0, %s56
      %s73 = sphi 0, %s57
      %s77 = sphi 0, %s77
      %s79 = sphi 0, %s77
      %s80 = sphi 0, %s79
      %s94 = sphi 0, %s80
      %s98 = sphi 0, %s98
      %s100 = sphi 0, %s98
      %s101 = sphi 0, %s100
      %s115 = sphi 0, %s101
      %s119 = sphi 0, %s119
      %s121 = sphi 0, %s119
      %s122 = sphi 0, %s121
      %s136 = sphi 0, %s122
      %s140 = sphi 0, %s140
      %s142 = sphi 0, %s140
      %s143 = sphi 0, %s142
      %s157 = sphi 0, %s143
      %s161 = sphi 0, %s161
      %s163 = sphi 0, %s161
      %s164 = sphi 0, %s163
      %s178 = sphi 0, %s164
      %s182 = sphi 0, %s182
      %s184 = sphi 0, %s182
      %s185 = sphi 0, %s184
      %s199 = sphi 0, %s185
      %s209 = sphi 0, %s211
      %s212 = sphi 0, %s209
      %s213 = sphi 0, %s212
      %s229 = sphi 0, %s213
      %s239 = sphi 0, %s241
      %s242 = sphi 0, %s239
      %s243 = sphi 0, %s242
      %s259 = sphi 0, %s243
      %s269 = sphi 0, %s271
      %s272 = sphi 0, %s269
      %s273 = sphi 0, %s272
      %s289 = sphi 0, %s273
    $region4: #{tpu_custom_call.1} parent=1 // loop_header_branch
      %25 = sbr.rel (%p23) target = $region8
    $region5: #{tpu_custom_call.1} parent=1 // loop_body
      %s27 = ssub.s32 %s22, 1
      %s28 = ssub.s32 %s22, 2
      %s38 = sadd.s32 1, %s31
      %p39 = scmp.ge.s32.totalorder %s38, 4
      %s40 = scalar_select %p39, 0, %s38
      %s41 = sadd.s32 1, %s30
      %s42 = scalar_select %p39, %s41, %s30
      %p43 = scmp.ge.s32.totalorder %s42, 1
      %s44 = scalar_select %p43, 0, %s42
      %s45 = sadd.s32 1, %s29
      %s46 = scalar_select %p43, %s45, %s29
      %p47 = scmp.ge.s32.totalorder %s46, 2
      %s48 = scalar_select %p47, 0, %s46
      %s49 = ssub.s32 %s29, %s48
      %s50 = ssub.s32 %s30, %s44
      %s51 = sor.u32 %s49, %s50
      %p52 = scmp.eq.s32.totalorder %s51, 0
      %s54 = sadd.s32 %s53, 1
      %s55 = scalar_select %p52, %s53, %s54
      %p58 = pneg %p52
      %p59 = scmp.eq.s32.totalorder %s22, 7
      %p60 = por %p58, %p59
      %p61 = scmp.ne.s32.totalorder %s53, %s56
      %p62 = scmp.eq.s32.totalorder %s22, 0
      %p63 = por %p61, %p62
      %p64 = scmp.ne.s32.totalorder %s53, %s56
      %p65 = scmp.eq.s32.totalorder %s27, 7
      %p66 = por %p64, %p65
      %p67 = scmp.ne.s32.totalorder %s56, %s57
      %p68 = scmp.eq.s32.totalorder %s27, 0
      %p69 = por %p67, %p68
      %p70 = scmp.ne.s32.totalorder %s56, %s57
      %p71 = scmp.eq.s32.totalorder %s28, 7
      %p72 = por %p70, %p71
      %p74 = scmp.ne.s32.totalorder %s57, %s73
      %p75 = scmp.eq.s32.totalorder %s28, 0
      %p76 = por %p74, %p75
      %s78 = sadd.s32 %s77, 1
      %p81 = scmp.eq.s32.totalorder %s22, 7
      %p82 = scmp.ne.s32.totalorder %s77, %s79
      %p83 = scmp.eq.s32.totalorder %s22, 0
      %p84 = por %p82, %p83
      %p85 = scmp.ne.s32.totalorder %s77, %s79
      %p86 = scmp.eq.s32.totalorder %s27, 7
      %p87 = por %p85, %p86
      %p88 = scmp.ne.s32.totalorder %s79, %s80
      %p89 = scmp.eq.s32.totalorder %s27, 0
      %p90 = por %p88, %p89
      %p91 = scmp.ne.s32.totalorder %s79, %s80
      %p92 = scmp.eq.s32.totalorder %s28, 7
      %p93 = por %p91, %p92
      %p95 = scmp.ne.s32.totalorder %s80, %s94
      %p96 = scmp.eq.s32.totalorder %s28, 0
      %p97 = por %p95, %p96
      %s99 = sadd.s32 %s98, 1
      %p102 = scmp.eq.s32.totalorder %s22, 7
      %p103 = scmp.ne.s32.totalorder %s98, %s100
      %p104 = scmp.eq.s32.totalorder %s22, 0
      %p105 = por %p103, %p104
      %p106 = scmp.ne.s32.totalorder %s98, %s100
      %p107 = scmp.eq.s32.totalorder %s27, 7
      %p108 = por %p106, %p107
      %p109 = scmp.ne.s32.totalorder %s100, %s101
      %p110 = scmp.eq.s32.totalorder %s27, 0
      %p111 = por %p109, %p110
      %p112 = scmp.ne.s32.totalorder %s100, %s101
      %p113 = scmp.eq.s32.totalorder %s28, 7
      %p114 = por %p112, %p113
      %p116 = scmp.ne.s32.totalorder %s101, %s115
      %p117 = scmp.eq.s32.totalorder %s28, 0
      %p118 = por %p116, %p117
      %s120 = sadd.s32 %s119, 1
      %p123 = scmp.eq.s32.totalorder %s22, 7
      %p124 = scmp.ne.s32.totalorder %s119, %s121
      %p125 = scmp.eq.s32.totalorder %s22, 0
      %p126 = por %p124, %p125
      %p127 = scmp.ne.s32.totalorder %s119, %s121
      %p128 = scmp.eq.s32.totalorder %s27, 7
      %p129 = por %p127, %p128
      %p130 = scmp.ne.s32.totalorder %s121, %s122
      %p131 = scmp.eq.s32.totalorder %s27, 0
      %p132 = por %p130, %p131
      %p133 = scmp.ne.s32.totalorder %s121, %s122
      %p134 = scmp.eq.s32.totalorder %s28, 7
      %p135 = por %p133, %p134
      %p137 = scmp.ne.s32.totalorder %s122, %s136
      %p138 = scmp.eq.s32.totalorder %s28, 0
      %p139 = por %p137, %p138
      %s141 = sadd.s32 %s140, 1
      %p144 = scmp.eq.s32.totalorder %s22, 7
      %p145 = scmp.ne.s32.totalorder %s140, %s142
      %p146 = scmp.eq.s32.totalorder %s22, 0
      %p147 = por %p145, %p146
      %p148 = scmp.ne.s32.totalorder %s140, %s142
      %p149 = scmp.eq.s32.totalorder %s27, 7
      %p150 = por %p148, %p149
      %p151 = scmp.ne.s32.totalorder %s142, %s143
      %p152 = scmp.eq.s32.totalorder %s27, 0
      %p153 = por %p151, %p152
      %p154 = scmp.ne.s32.totalorder %s142, %s143
      %p155 = scmp.eq.s32.totalorder %s28, 7
      %p156 = por %p154, %p155
      %p158 = scmp.ne.s32.totalorder %s143, %s157
      %p159 = scmp.eq.s32.totalorder %s28, 0
      %p160 = por %p158, %p159
      %s162 = sadd.s32 %s161, 1
      %p165 = scmp.eq.s32.totalorder %s22, 7
      %p166 = scmp.ne.s32.totalorder %s161, %s163
      %p167 = scmp.eq.s32.totalorder %s22, 0
      %p168 = por %p166, %p167
      %p169 = scmp.ne.s32.totalorder %s161, %s163
      %p170 = scmp.eq.s32.totalorder %s27, 7
      %p171 = por %p169, %p170
      %p172 = scmp.ne.s32.totalorder %s163, %s164
      %p173 = scmp.eq.s32.totalorder %s27, 0
      %p174 = por %p172, %p173
      %p175 = scmp.ne.s32.totalorder %s163, %s164
      %p176 = scmp.eq.s32.totalorder %s28, 7
      %p177 = por %p175, %p176
      %p179 = scmp.ne.s32.totalorder %s164, %s178
      %p180 = scmp.eq.s32.totalorder %s28, 0
      %p181 = por %p179, %p180
      %s183 = sadd.s32 %s182, 1
      %p186 = scmp.eq.s32.totalorder %s22, 7
      %p187 = scmp.ne.s32.totalorder %s182, %s184
      %p188 = scmp.eq.s32.totalorder %s22, 0
      %p189 = por %p187, %p188
      %p190 = scmp.ne.s32.totalorder %s182, %s184
      %p191 = scmp.eq.s32.totalorder %s27, 7
      %p192 = por %p190, %p191
      %p193 = scmp.ne.s32.totalorder %s184, %s185
      %p194 = scmp.eq.s32.totalorder %s27, 0
      %p195 = por %p193, %p194
      %p196 = scmp.ne.s32.totalorder %s184, %s185
      %p197 = scmp.eq.s32.totalorder %s28, 7
      %p198 = por %p196, %p197
      %p200 = scmp.ne.s32.totalorder %s185, %s199
      %p201 = scmp.eq.s32.totalorder %s28, 0
      %p202 = por %p200, %p201
      %s203 = ssub.s32 %s29, %s48
      %s204 = ssub.s32 %s31, %s40
      %s205 = sor.u32 %s203, %s204
      %s206 = ssub.s32 %s30, %s44
      %s207 = sor.u32 %s205, %s206
      %p208 = scmp.eq.s32.totalorder %s207, 0
      %s210 = sadd.s32 %s209, 1
      %s211 = scalar_select %p208, %s209, %s210
      %p214 = pneg %p208
      %p215 = scmp.eq.s32.totalorder %s22, 7
      %p216 = por %p214, %p215
      %p217 = scmp.ne.s32.totalorder %s209, %s212
      %p218 = scmp.eq.s32.totalorder %s22, 0
      %p219 = por %p217, %p218
      %p220 = scmp.ne.s32.totalorder %s209, %s212
      %p221 = scmp.eq.s32.totalorder %s27, 7
      %p222 = por %p220, %p221
      %p223 = scmp.ne.s32.totalorder %s212, %s213
      %p224 = scmp.eq.s32.totalorder %s27, 0
      %p225 = por %p223, %p224
      %p226 = scmp.ne.s32.totalorder %s212, %s213
      %p227 = scmp.eq.s32.totalorder %s28, 7
      %p228 = por %p226, %p227
      %p230 = scmp.ne.s32.totalorder %s213, %s229
      %p231 = scmp.eq.s32.totalorder %s28, 0
      %p232 = por %p230, %p231
      %s233 = ssub.s32 %s29, %s48
      %s234 = ssub.s32 %s31, %s40
      %s235 = sor.u32 %s233, %s234
      %s236 = ssub.s32 %s30, %s44
      %s237 = sor.u32 %s235, %s236
      %p238 = scmp.eq.s32.totalorder %s237, 0
      %s240 = sadd.s32 %s239, 1
      %s241 = scalar_select %p238, %s239, %s240
      %p244 = pneg %p238
      %p245 = scmp.eq.s32.totalorder %s22, 7
      %p246 = por %p244, %p245
      %p247 = scmp.ne.s32.totalorder %s239, %s242
      %p248 = scmp.eq.s32.totalorder %s22, 0
      %p249 = por %p247, %p248
      %p250 = scmp.ne.s32.totalorder %s239, %s242
      %p251 = scmp.eq.s32.totalorder %s27, 7
      %p252 = por %p250, %p251
      %p253 = scmp.ne.s32.totalorder %s242, %s243
      %p254 = scmp.eq.s32.totalorder %s27, 0
      %p255 = por %p253, %p254
      %p256 = scmp.ne.s32.totalorder %s242, %s243
      %p257 = scmp.eq.s32.totalorder %s28, 7
      %p258 = por %p256, %p257
      %p260 = scmp.ne.s32.totalorder %s243, %s259
      %p261 = scmp.eq.s32.totalorder %s28, 0
      %p262 = por %p260, %p261
      %s263 = ssub.s32 %s29, %s48
      %s264 = ssub.s32 %s31, %s40
      %s265 = sor.u32 %s263, %s264
      %s266 = ssub.s32 %s30, %s44
      %s267 = sor.u32 %s265, %s266
      %p268 = scmp.eq.s32.totalorder %s267, 0
      %s270 = sadd.s32 %s269, 1
      %s271 = scalar_select %p268, %s269, %s270
      %p274 = pneg %p268
      %p275 = scmp.eq.s32.totalorder %s22, 7
      %p276 = por %p274, %p275
      %p277 = scmp.ne.s32.totalorder %s269, %s272
      %p278 = scmp.eq.s32.totalorder %s22, 0
      %p279 = por %p277, %p278
      %p280 = scmp.ne.s32.totalorder %s269, %s272
      %p281 = scmp.eq.s32.totalorder %s27, 7
      %p282 = por %p280, %p281
      %p283 = scmp.ne.s32.totalorder %s272, %s273
      %p284 = scmp.eq.s32.totalorder %s27, 0
      %p285 = por %p283, %p284
      %p286 = scmp.ne.s32.totalorder %s272, %s273
      %p287 = scmp.eq.s32.totalorder %s28, 7
      %p288 = por %p286, %p287
      %p290 = scmp.ne.s32.totalorder %s273, %s289
      %p291 = scmp.eq.s32.totalorder %s28, 0
      %p292 = por %p290, %p291
      %p293 = scmp.le.s32.totalorder 1, %s22
      %p294 = scmp.lt.s32.totalorder %s22, 9
      %p295 = pnand %p293, %p294
      %p296 = pneg %p295
      // Predicated region
      $region9: #{tpu_custom_call.1} parent=5 // pred_check
        _
      $region10: #{tpu_custom_call.1} parent=5 // pred_check_branch
        %298 = sbr.rel (%p295) target = $region12
      $region11: #{tpu_custom_call.1} parent=5 // pred_region
        %s299 = ssub.s32 %s22, 1
        // Predicated region
        $region13: #{tpu_custom_call.1} parent=11 // pred_check
          %p300 = pneg %p90
        $region14: #{tpu_custom_call.1} parent=11 // pred_check_branch
          %302 = sbr.rel (%p300) target = $region16
        $region15: #{tpu_custom_call.1} parent=11 // pred_region
          _
        $region16: #{tpu_custom_call.1} parent=11 // pred_fallthru
          _
        // Predicated region
        $region17: #{tpu_custom_call.1} parent=11 // pred_check
          %p303 = pneg %p111
        $region18: #{tpu_custom_call.1} parent=11 // pred_check_branch
          %305 = sbr.rel (%p303) target = $region20
        $region19: #{tpu_custom_call.1} parent=11 // pred_region
          _
        $region20: #{tpu_custom_call.1} parent=11 // pred_fallthru
          _
        // Predicated region
        $region21: #{tpu_custom_call.1} parent=11 // pred_check
          %p306 = pneg %p132
        $region22: #{tpu_custom_call.1} parent=11 // pred_check_branch
          %308 = sbr.rel (%p306) target = $region24
        $region23: #{tpu_custom_call.1} parent=11 // pred_region
          _
        $region24: #{tpu_custom_call.1} parent=11 // pred_fallthru
          _
        // Predicated region
        $region25: #{tpu_custom_call.1} parent=11 // pred_check
          %p309 = pneg %p153
        $region26: #{tpu_custom_call.1} parent=11 // pred_check_branch
          %311 = sbr.rel (%p309) target = $region28
        $region27: #{tpu_custom_call.1} parent=11 // pred_region
          _
        $region28: #{tpu_custom_call.1} parent=11 // pred_fallthru
          _
        // Predicated region
        $region29: #{tpu_custom_call.1} parent=11 // pred_check
          %p312 = pneg %p174
        $region30: #{tpu_custom_call.1} parent=11 // pred_check_branch
          %314 = sbr.rel (%p312) target = $region32
        $region31: #{tpu_custom_call.1} parent=11 // pred_region
          _
        $region32: #{tpu_custom_call.1} parent=11 // pred_fallthru
          _
        // Predicated region
        $region33: #{tpu_custom_call.1} parent=11 // pred_check
          %p315 = pneg %p195
        $region34: #{tpu_custom_call.1} parent=11 // pred_check_branch
          %317 = sbr.rel (%p315) target = $region36
        $region35: #{tpu_custom_call.1} parent=11 // pred_region
          _
        $region36: #{tpu_custom_call.1} parent=11 // pred_fallthru
          _
      $region12: #{tpu_custom_call.1} parent=5 // pred_fallthru
        _
      %p318 = scmp.lt.s32.totalorder %s22, 8
      // Predicated region
      $region37: #{tpu_custom_call.1} parent=5 // pred_check
        %p319 = pneg %p318
      $region38: #{tpu_custom_call.1} parent=5 // pred_check_branch
        %321 = sbr.rel (%p319) target = $region40
      $region39: #{tpu_custom_call.1} parent=5 // pred_region
        // Predicated region
        $region41: #{tpu_custom_call.1} parent=39 // pred_check
          %p322 = pneg %p63
        $region42: #{tpu_custom_call.1} parent=39 // pred_check_branch
          %324 = sbr.rel (%p322) target = $region44
        $region43: #{tpu_custom_call.1} parent=39 // pred_region
          %p325 = scmp.lt.s32.totalorder %s29, 1
          %s326 = scalar_select %p325, %s29, 1
          %p327 = scmp.lt.s32.totalorder %s30, 0
          %s328 = scalar_select %p327, %s30, 0
          %s329 = sadd.s32 %s328, %s326
          %s330 = smul.addr %s329, 4
          %s331 = scalar_lea.vmem %s0, %s330
        $region44: #{tpu_custom_call.1} parent=39 // pred_fallthru
          _
      $region40: #{tpu_custom_call.1} parent=5 // pred_fallthru
        _
      %p332 = scmp.le.s32.totalorder 1, %s22
      %p333 = scmp.lt.s32.totalorder %s22, 9
      %p334 = pnand %p332, %p333
      %p335 = pneg %p334
      // Predicated region
      $region45: #{tpu_custom_call.1} parent=5 // pred_check
        _
      $region46: #{tpu_custom_call.1} parent=5 // pred_check_branch
        %337 = sbr.rel (%p334) target = $region48
      $region47: #{tpu_custom_call.1} parent=5 // pred_region
        %s338 = ssub.s32 %s22, 1
        %p339 = scmp.lt.s32.totalorder %s32, 1
        %s340 = scalar_select %p339, %s32, 1
        %p341 = scmp.lt.s32.totalorder %s33, 0
        %s342 = scalar_select %p341, %s33, 0
        %s343 = sadd.s32 %s342, %s340
        %s344 = smul.addr %s343, 4
        %s345 = scalar_lea.vmem %s0, %s344
        %p346 = pneg %p69
        %p347 = pneg %p66
        %p348 = pneg %p90
        %p349 = pneg %p87
        %p350 = pneg %p111
        %p351 = pneg %p108
        %p352 = pneg %p132
        %p353 = pneg %p129
        %p354 = pneg %p153
        %p355 = pneg %p150
        %p356 = pneg %p174
        %p357 = pneg %p171
        %p358 = pneg %p195
        %p359 = pneg %p192
        %p360 = pneg %p225
        %p361 = pneg %p222
        %s362 = sand.u32 %s212, 1
        %s363 = scalar_lea.sflag [#allocation3], %s362
        %s364 = sand.u32 %s212, 1
        %s365 = smul.addr %s364, 4
        %s366 = scalar_lea.vmem [#allocation2], %s365
        %p367 = pneg %p255
        %p368 = pneg %p252
        %s369 = sand.u32 %s27, 1
        %s370 = scalar_lea.sflag [#allocation5], %s369
        %s371 = sand.u32 %s242, 1
        %s372 = smul.addr %s371, 4
        %s373 = scalar_lea.vmem [#allocation4], %s372
        %p374 = pneg %p285
        %p375 = pneg %p282
        %s376 = sand.u32 %s27, 1
        %s377 = scalar_lea.sflag [#allocation5], %s376
        %s378 = sand.u32 %s272, 1
        %s379 = smul.addr %s378, 4
        %s380 = scalar_lea.vmem [#allocation6], %s379
        %p381 = scmp.lt.s32.totalorder %s32, 1
        %s382 = scalar_select %p381, %s32, 1
        %p383 = scmp.lt.s32.totalorder %s33, 0
        %s384 = scalar_select %p383, %s33, 0
        %s385 = sadd.s32 %s384, %s382
        %s386 = smul.addr %s385, 4
        %s387 = scalar_lea.vmem %s0, %s386
        %v389 = vld [vmem:[%s387] sm:$0xf]
        %s390 = smul.u32 %s34, 4
        %s391 = smul.addr %s390, 4
        %s392 = scalar_lea.vmem %s1, %s391
        %v393 = vld [vmem:[%s392] sm:$0xf]
        %v394 = vld [vmem:[%s392 + $0x4] sm:$0xf]
        %v395 = vld [vmem:[%s392 + $0x8] sm:$0xf]
        %v396 = vld [vmem:[%s392 + $0xc] sm:$0xf]
        %s397 = scalar_lea.vmem %s2, %s34
        %v398 = vld [vmem:[%s397] sm:$0x1]
        %v400 = vperm.slane %v398, 0
        %v406 = vunpack.c.l.b16 %v393
        %v407 = vunpack.c.l.b16 %v394
        %v408 = vunpack.c.l.b16 %v395
        %v409 = vunpack.c.l.b16 %v396
        %v410 = vpack.c.b16 %v407, %v406
        %v411 = vpack.c.b16 %v409, %v408
        %vm414 = vcmask 261120
        %v416 = vsel %vm414, %v389, 0
        %418 = vmatpush.bf16.msra.mxu0 0
        %419 = vmatpush.bf16.msra.mxu0 0
        %420 = vmatpush.bf16.msra.mxu0 0
        %421 = vmatpush.bf16.msra.mxu0 0
        %422 = vmatpush.bf16.msra.mxu0 0
        %423 = vmatpush.bf16.msra.mxu0 0
        %424 = vmatpush.bf16.msra.mxu0 %v411
        %425 = vmatpush.bf16.msra.mxu0 %v410
        %426 = vmatmul.bf16.gmra.mxu0 %v416
        %v427 = vpop.f32.mrf.mxu0
        %v428 = vadd.f32 %v400, %v427
        %v429 = vpop.f32.mrf.mxu0
        %430 = vdwg.mxu0
        %v431 = vpack.c.bf16 %v428, %v428
        %vm432 = vcmask 60416
        %433 = vst.msk [vmem:[%s366] sm:$0xf] %vm432, %v431
        %s434 = smul.addr %s390, 4
        %s435 = scalar_lea.vmem %s3, %s434
        %v436 = vld [vmem:[%s435] sm:$0xf]
        %v437 = vld [vmem:[%s435 + $0x4] sm:$0xf]
        %v438 = vld [vmem:[%s435 + $0x8] sm:$0xf]
        %v439 = vld [vmem:[%s435 + $0xc] sm:$0xf]
        %s440 = scalar_lea.vmem %s4, %s34
        %v441 = vld [vmem:[%s440] sm:$0x1]
        %v443 = vperm.slane %v441, 0
        %v449 = vunpack.c.l.b16 %v436
        %v450 = vunpack.c.l.b16 %v437
        %v451 = vunpack.c.l.b16 %v438
        %v452 = vunpack.c.l.b16 %v439
        %v453 = vpack.c.b16 %v450, %v449
        %v454 = vpack.c.b16 %v452, %v451
        %457 = vmatpush.bf16.msra.mxu0 0
        %458 = vmatpush.bf16.msra.mxu0 0
        %459 = vmatpush.bf16.msra.mxu0 0
        %460 = vmatpush.bf16.msra.mxu0 0
        %461 = vmatpush.bf16.msra.mxu0 0
        %462 = vmatpush.bf16.msra.mxu0 0
        %463 = vmatpush.bf16.msra.mxu0 %v454
        %464 = vmatpush.bf16.msra.mxu0 %v453
        %465 = vmatmul.bf16.gmra.mxu0 %v416
        %v466 = vpop.f32.mrf.mxu0
        %v467 = vadd.f32 %v443, %v466
        %v468 = vpop.f32.mrf.mxu0
        %469 = vdwg.mxu0
        %v470 = vpack.c.bf16 %v467, %v467
        %471 = vst.msk [vmem:[%s373] sm:$0xf] %vm432, %v470
        %s472 = smul.addr %s390, 4
        %s473 = scalar_lea.vmem %s5, %s472
        %v474 = vld [vmem:[%s473] sm:$0xf]
        %v475 = vld [vmem:[%s473 + $0x4] sm:$0xf]
        %v476 = vld [vmem:[%s473 + $0x8] sm:$0xf]
        %v477 = vld [vmem:[%s473 + $0xc] sm:$0xf]
        %s478 = scalar_lea.vmem %s6, %s34
        %v479 = vld [vmem:[%s478] sm:$0x1]
        %v481 = vperm.slane %v479, 0
        %v487 = vunpack.c.l.b16 %v474
        %v488 = vunpack.c.l.b16 %v475
        %v489 = vunpack.c.l.b16 %v476
        %v490 = vunpack.c.l.b16 %v477
        %v491 = vpack.c.b16 %v488, %v487
        %v492 = vpack.c.b16 %v490, %v489
        %495 = vmatpush.bf16.msra.mxu0 0
        %496 = vmatpush.bf16.msra.mxu0 0
        %497 = vmatpush.bf16.msra.mxu0 0
        %498 = vmatpush.bf16.msra.mxu0 0
        %499 = vmatpush.bf16.msra.mxu0 0
        %500 = vmatpush.bf16.msra.mxu0 0
        %501 = vmatpush.bf16.msra.mxu0 %v492
        %502 = vmatpush.bf16.msra.mxu0 %v491
        %503 = vmatmul.bf16.gmra.mxu0 %v416
        %v504 = vpop.f32.mrf.mxu0
        %v505 = vadd.f32 %v481, %v504
        %v506 = vpop.f32.mrf.mxu0
        %507 = vdwg.mxu0
        %v508 = vpack.c.bf16 %v505, %v505
        %509 = vst.msk [vmem:[%s380] sm:$0xf] %vm432, %v508
        %s510 = sand.u32 %s212, 1
        %s511 = scalar_lea.sflag [#allocation3], %s510
        %s512 = sand.u32 %s212, 1
        %s513 = smul.addr %s512, 4
        %s514 = scalar_lea.vmem [#allocation2], %s513
        %s515 = sand.u32 %s27, 1
        %s516 = scalar_lea.sflag [#allocation5], %s515
        %s517 = sand.u32 %s242, 1
        %s518 = smul.addr %s517, 4
        %s519 = scalar_lea.vmem [#allocation4], %s518
        %s520 = sand.u32 %s27, 1
        %s521 = scalar_lea.sflag [#allocation5], %s520
        %s522 = sand.u32 %s272, 1
        %s523 = smul.addr %s522, 4
        %s524 = scalar_lea.vmem [#allocation6], %s523
        // Predicated region
        $region49: #{tpu_custom_call.1} parent=47 // pred_check
          %p525 = pneg %p222
        $region50: #{tpu_custom_call.1} parent=47 // pred_check_branch
          %527 = sbr.rel (%p525) target = $region52
        $region51: #{tpu_custom_call.1} parent=47 // pred_region
          %529 = vsyncadd %s511, 0
          %s530 = sadd.s32 %s33, %s34
          %s531 = smul.addr %s32, 4
          %s532 = sadd.s32 %s530, %s531
          %s533 = smul.addr %s532, 4
          %s534 = scalar_lea.hbm %s7, %s533
          %s536 = sshll.u32 %s514, 4
          %s537 = int_to_ptr.vmem [resolvable:$true] %s536
          %s538 = sshll.u32 %s534, 4
          %s539 = int_to_ptr.hbm [resolvable:$true] %s538
          %541 = dma.vmem_to_hbm [thread:$0]  %s537, 64, %s539, %s511
        $region52: #{tpu_custom_call.1} parent=47 // pred_fallthru
          _
        // Predicated region
        $region53: #{tpu_custom_call.1} parent=47 // pred_check
          %p542 = pneg %p252
        $region54: #{tpu_custom_call.1} parent=47 // pred_check_branch
          %544 = sbr.rel (%p542) target = $region56
        $region55: #{tpu_custom_call.1} parent=47 // pred_region
          %546 = vsyncadd %s516, 0
          %s547 = sadd.s32 %s33, %s34
          %s548 = smul.addr %s32, 4
          %s549 = sadd.s32 %s547, %s548
          %s550 = smul.addr %s549, 4
          %s551 = scalar_lea.hbm %s8, %s550
          %s553 = sshll.u32 %s519, 4
          %s554 = int_to_ptr.vmem [resolvable:$true] %s553
          %s555 = sshll.u32 %s551, 4
          %s556 = int_to_ptr.hbm [resolvable:$true] %s555
          %558 = dma.vmem_to_hbm [thread:$0]  %s554, 64, %s556, %s516
        $region56: #{tpu_custom_call.1} parent=47 // pred_fallthru
          _
        // Predicated region
        $region57: #{tpu_custom_call.1} parent=47 // pred_check
          %p559 = pneg %p282
        $region58: #{tpu_custom_call.1} parent=47 // pred_check_branch
          %561 = sbr.rel (%p559) target = $region60
        $region59: #{tpu_custom_call.1} parent=47 // pred_region
          %563 = vsyncadd %s521, 0
          %s564 = sadd.s32 %s33, %s34
          %s565 = smul.addr %s32, 4
          %s566 = sadd.s32 %s564, %s565
          %s567 = smul.addr %s566, 4
          %s568 = scalar_lea.hbm %s9, %s567
          %s570 = sshll.u32 %s524, 4
          %s571 = int_to_ptr.vmem [resolvable:$true] %s570
          %s572 = sshll.u32 %s568, 4
          %s573 = int_to_ptr.hbm [resolvable:$true] %s572
          %575 = dma.vmem_to_hbm [thread:$0]  %s571, 64, %s573, %s521
        $region60: #{tpu_custom_call.1} parent=47 // pred_fallthru
          _
      $region48: #{tpu_custom_call.1} parent=5 // pred_fallthru
        _
      %p576 = scmp.le.s32.totalorder 2, %s22
      // Predicated region
      $region61: #{tpu_custom_call.1} parent=5 // pred_check
        %p577 = pneg %p576
      $region62: #{tpu_custom_call.1} parent=5 // pred_check_branch
        %579 = sbr.rel (%p577) target = $region64
      $region63: #{tpu_custom_call.1} parent=5 // pred_region
        %s580 = ssub.s32 %s22, 2
        // Predicated region
        $region65: #{tpu_custom_call.1} parent=63 // pred_check
          %p581 = pneg %p228
        $region66: #{tpu_custom_call.1} parent=63 // pred_check_branch
          %583 = sbr.rel (%p581) target = $region68
        $region67: #{tpu_custom_call.1} parent=63 // pred_region
          %s584 = sand.u32 %s213, 1
          %s585 = scalar_lea.sflag [#allocation3], %s584
          %s586 = sand.u32 %s213, 1
          %s587 = smul.addr %s586, 4
          %s588 = scalar_lea.vmem [#allocation2], %s587
          %590 = dma.done %s585, 64
        $region68: #{tpu_custom_call.1} parent=63 // pred_fallthru
          _
        // Predicated region
        $region69: #{tpu_custom_call.1} parent=63 // pred_check
          %p591 = pneg %p258
        $region70: #{tpu_custom_call.1} parent=63 // pred_check_branch
          %593 = sbr.rel (%p591) target = $region72
        $region71: #{tpu_custom_call.1} parent=63 // pred_region
          %s594 = sand.u32 %s28, 1
          %s595 = scalar_lea.sflag [#allocation5], %s594
          %s596 = sand.u32 %s243, 1
          %s597 = smul.addr %s596, 4
          %s598 = scalar_lea.vmem [#allocation4], %s597
          %600 = dma.done %s595, 64
        $region72: #{tpu_custom_call.1} parent=63 // pred_fallthru
          _
        // Predicated region
        $region73: #{tpu_custom_call.1} parent=63 // pred_check
          %p601 = pneg %p288
        $region74: #{tpu_custom_call.1} parent=63 // pred_check_branch
          %603 = sbr.rel (%p601) target = $region76
        $region75: #{tpu_custom_call.1} parent=63 // pred_region
          %s604 = sand.u32 %s28, 1
          %s605 = scalar_lea.sflag [#allocation5], %s604
          %s606 = sand.u32 %s273, 1
          %s607 = smul.addr %s606, 4
          %s608 = scalar_lea.vmem [#allocation6], %s607
          %610 = dma.done %s605, 64
        $region76: #{tpu_custom_call.1} parent=63 // pred_fallthru
          _
      $region64: #{tpu_custom_call.1} parent=5 // pred_fallthru
        _
    $region6: #{tpu_custom_call.1} parent=1 // loop_footer
      %s26 = sadd.s32 1, %s22
    $region7: #{tpu_custom_call.1} parent=1 // loop_footer_branch
      %21 = sbr.rel target = $region3
    $region8: #{tpu_custom_call.1} parent=1 // loop_exit
      _
    %611 = vsyncpa [#allocation3], 1
    %s612 = scalar_lea.sflag [#allocation3], 1
    %613 = vsyncpa %s612, 1
    %614 = vsyncpa [#allocation5], 1
    %s615 = scalar_lea.sflag [#allocation5], 1
    %616 = vsyncpa %s615, 1

</llo_original>
